<compile_context>
chip_gen: v5e
topology: v5e:2x2
jax: 0.10.0
libtpu: 0.0.40
codegen_flags: <defaults>
</compile_context>

<pallas_src>
from functools import partial

import jax
import jax.numpy as jnp
from jax.experimental import pallas as pl
from jax.experimental.pallas import tpu as pltpu


def _involution_kernel(xf_ref, w1_ref, b1_ref, w2_ref, b2_ref, out_ref, wt_ref,
                       *, H, K, Wpp, GC, G):
    """One batch element; spatial dims flattened onto the lane axis.

    xf_ref : (C, Hpp*Wpp)   zero-padded input, flat with row stride Wpp
    w1_ref : (Cr, C)        conv1 1x1 weight with BN scale folded in
    b1_ref : (Cr, 1)        fused BN shift
    w2_ref : (G*K2, Cr)     conv2 1x1 weight (per group/tap, NOT GC-expanded)
    b2_ref : (G*K2, 1)      conv2 bias
    out_ref: (C, H*Wpp)     output; valid columns are y*Wpp + x with x < W
    wt_ref : VMEM scratch (G*K2, H*Wpp) holding the involution kernel values
    """
    K2 = K * K
    pad = (K - 1) // 2
    N = H * Wpp

    # ---- conv1 (1x1) + fused BN + ReLU: one lane-dense matmul ------------
    xc = xf_ref[:, pl.ds(pad * Wpp + pad, N)]                      # (C, N)
    h = jnp.dot(w1_ref[...], xc, preferred_element_type=jnp.float32)
    h = jnp.maximum(h + b1_ref[...], 0.0)                          # (Cr, N) f32

    # ---- conv2 (1x1): ONE fused matmul for all G*K2 kernel rows ----------
    wt_ref[...] = (jnp.dot(w2_ref[...], h.astype(w2_ref.dtype),
                           preferred_element_type=jnp.float32)
                   + b2_ref[...])                                   # (G*K2, N)

    # ---- involution: per-group multiply-accumulate over the K*K taps -----
    # Each tap is a contiguous lane-slice of the flat padded input; the
    # per-group kernel row is broadcast over the GC sublanes of its group.
    for g in range(G):
        c0 = g * GC
        acc = jnp.zeros((GC, N), jnp.float32)
        for ky in range(K):
            for kx in range(K):
                r = g * K2 + ky * K + kx
                wt_row = wt_ref[pl.ds(r, 1), :]                     # (1, N) f32
                xg = xf_ref[pl.ds(c0, GC), pl.ds(ky * Wpp + kx, N)]  # (GC, N)
                acc = acc + wt_row * xg.astype(jnp.float32)
        out_ref[pl.ds(c0, GC), :] = acc.astype(out_ref.dtype)


def involution_pallas(x_nchw, params, *, kernel_size=3, stride=1,
                      group_channels=16, eps=1e-5, compute_dtype=None):
    """Involution forward, NCHW in / NCHW out.

    compute_dtype: dtype used for the MXU matmul operands (e.g. jnp.bfloat16
    on v6e/v7x); accumulation and the tap MAC stay f32.  Default: x's dtype.
    """
    # TODO(synk): stride > 1 (AvgPool2d + strided Unfold) not implemented.
    assert stride == 1
    B, C, H, W = x_nchw.shape
    K = kernel_size
    K2 = K * K
    pad = (K - 1) // 2
    GC = group_channels
    G = C // GC
    Cr = params["w1"].shape[0]
    cdt = x_nchw.dtype if compute_dtype is None else compute_dtype

    # ---- parameter prep (plain JAX glue): fold BN into conv1 -------------
    inv_std = 1.0 / jnp.sqrt(params["var"] + eps)
    scale = params["gamma"] * inv_std
    w1 = (params["w1"] * scale[:, None]).astype(cdt)                # (Cr, C)
    b1 = (params["beta"] - params["mean"] * scale).reshape(Cr, 1).astype(jnp.float32)
    w2 = params["w2"].astype(cdt)                                   # (G*K2, Cr)
    b2 = params["b2"].reshape(G * K2, 1).astype(jnp.float32)

    # ---- input prep: zero-pad, flatten spatial dims onto the lane axis ---
    # TODO(synk): for very large H*W / C (v7x, 64 MiB VMEM) add an H-strip
    # grid axis with K-1 halo rows and move the zero-padding into the kernel.
    Wpp = W + 2 * pad            # padded row stride
    Hpp = H + 2 * pad + 1        # +1 slack row keeps the last tap slice in-bounds
    L = Hpp * Wpp
    N = H * Wpp                  # per-tap slice length / output lane width
    xf = jnp.pad(x_nchw, ((0, 0), (0, 0), (pad, pad + 1), (pad, pad)))
    xf = xf.reshape(B, C, L).astype(cdt)

    kernel = partial(_involution_kernel, H=H, K=K, Wpp=Wpp, GC=GC, G=G)
    flops = int(B) * int(N) * 2 * (Cr * C + G * K2 * Cr + K2 * C)
    bytes_accessed = int(
        xf.size * xf.dtype.itemsize
        + B * C * N * x_nchw.dtype.itemsize
        + w1.size * w1.dtype.itemsize + w2.size * w2.dtype.itemsize
        + b1.size * 4 + b2.size * 4)

    out_flat = pl.pallas_call(
        kernel,
        out_shape=jax.ShapeDtypeStruct((B, C, N), x_nchw.dtype),
        grid=(B,),
        in_specs=[
            pl.BlockSpec((None, C, L), lambda b: (b, 0, 0)),
            pl.BlockSpec((Cr, C), lambda b: (0, 0)),
            pl.BlockSpec((Cr, 1), lambda b: (0, 0)),
            pl.BlockSpec((G * K2, Cr), lambda b: (0, 0)),
            pl.BlockSpec((G * K2, 1), lambda b: (0, 0)),
        ],
        out_specs=pl.BlockSpec((None, C, N), lambda b: (b, 0, 0)),
        scratch_shapes=[pltpu.VMEM((G * K2, N), jnp.float32)],
        compiler_params=pltpu.CompilerParams(
            dimension_semantics=("parallel",)),
        cost_estimate=pl.CostEstimate(flops=flops, transcendentals=0,
                                      bytes_accessed=bytes_accessed),
    )(xf, w1, b1, w2, b2)

    # drop the padded-width columns and restore (B, C, H, W)
    return out_flat.reshape(B, C, H, Wpp)[:, :, :, :W]


def involution_reference(x, params, *, kernel_size=3, group_channels=16, eps=1e-5):
    """Pure-JAX re-implementation of the PyTorch forward (NCHW), for checking."""
    B, C, H, W = x.shape
    K = kernel_size
    K2 = K * K
    pad = (K - 1) // 2
    G = C // group_channels
    GC = group_channels
    hi = jnp.einsum('oc,bchw->bohw', params["w1"], x,
                    precision=jax.lax.Precision.HIGHEST)
    scale = params["gamma"] / jnp.sqrt(params["var"] + eps)
    shift = params["beta"] - params["mean"] * scale
    hi = jnp.maximum(hi * scale[None, :, None, None] + shift[None, :, None, None], 0.0)
    wt = jnp.einsum('or,brhw->bohw', params["w2"], hi,
                    precision=jax.lax.Precision.HIGHEST)
    wt = wt + params["b2"][None, :, None, None]
    wt = wt.reshape(B, G, K2, H, W)
    xpad = jnp.pad(x, ((0, 0), (0, 0), (pad, pad), (pad, pad)))
    patches = jnp.stack([xpad[:, :, ky:ky + H, kx:kx + W]
                         for ky in range(K) for kx in range(K)], axis=2)  # (B,C,K2,H,W)
    unf = patches.reshape(B, G, GC, K2, H, W)
    out = (wt[:, :, None] * unf).sum(axis=3).reshape(B, C, H, W)
    return out


if __name__ == "__main__":
    # channels must be divisible by group_channels (16) and reduction (4)
    B, C, H, W = 2, 32, 16, 16
    K = 3
    stride = 1
    reduction = 4
    GC = 16
    G = C // GC
    Cr = C // reduction
    K2 = K * K

    key = jax.random.PRNGKey(0)
    ks = jax.random.split(key, 8)
    params = dict(
        w1=jax.random.normal(ks[0], (Cr, C), jnp.float32) * 0.2,        # conv1 1x1 weight
        gamma=jax.random.uniform(ks[1], (Cr,), jnp.float32, 0.5, 1.5),  # BN weight
        beta=jax.random.normal(ks[2], (Cr,), jnp.float32) * 0.1,        # BN bias
        mean=jax.random.normal(ks[3], (Cr,), jnp.float32) * 0.1,        # BN running_mean
        var=jax.random.uniform(ks[4], (Cr,), jnp.float32, 0.5, 1.5),    # BN running_var
        w2=jax.random.normal(ks[5], (K2 * G, Cr), jnp.float32) * 0.2,   # conv2 1x1 weight
        b2=jax.random.normal(ks[6], (K2 * G,), jnp.float32) * 0.1,      # conv2 bias
    )
    x = jax.random.normal(ks[7], (B, C, H, W), jnp.float32)

    out = involution_pallas(x, params, kernel_size=K, stride=stride,
                            group_channels=GC)
    out = jax.block_until_ready(out)

    ref = involution_reference(x, params, kernel_size=K, group_channels=GC)
    assert out.shape == (B, C, H, W)
    err = jnp.max(jnp.abs(out - ref))
    assert jnp.allclose(out, ref, atol=1e-3, rtol=1e-3), f"max abs err {err}"

    print("KERNEL_OK")
</pallas_src>

<mosaic_0001>
module attributes {stable_mosaic.version = 11 : i64} {
  func.func @_involution_kernel(%arg0: i32, %arg1: memref<1x32x342xf32, #tpu.memory_space<vmem>>, %arg2: memref<8x32xf32, #tpu.memory_space<vmem>>, %arg3: memref<8x1xf32, #tpu.memory_space<vmem>>, %arg4: memref<18x8xf32, #tpu.memory_space<vmem>>, %arg5: memref<18x1xf32, #tpu.memory_space<vmem>>, %arg6: memref<1x32x288xf32, #tpu.memory_space<vmem>>, %arg7: memref<18x288xf32, #tpu.memory_space<vmem>>) attributes {dimension_semantics = [#tpu.dimension_semantics<parallel>], iteration_bounds = array<i64: 2>, scalar_prefetch = 0 : i64, scratch_operands = 1 : i64, tpu.core_type = #tpu.core_type<tc>, window_params = [{transform_indices = @transform_0, window_bounds = array<i64: 1, 32, 342>}, {pipeline_mode = #tpu.pipeline_mode<synchronous>, transform_indices = @transform_1, window_bounds = array<i64: 8, 32>}, {pipeline_mode = #tpu.pipeline_mode<synchronous>, transform_indices = @transform_2, window_bounds = array<i64: 8, 1>}, {pipeline_mode = #tpu.pipeline_mode<synchronous>, transform_indices = @transform_3, window_bounds = array<i64: 18, 8>}, {pipeline_mode = #tpu.pipeline_mode<synchronous>, transform_indices = @transform_4, window_bounds = array<i64: 18, 1>}, {transform_indices = @transform_5, window_bounds = array<i64: 1, 32, 288>}]} {
    %c0 = arith.constant 0 : index
    %c0_0 = arith.constant 0 : index
    %c19 = arith.constant 19 : index
    %0 = vector.load %arg1[%c0, %c0_0, %c19] : memref<1x32x342xf32, #tpu.memory_space<vmem>>, vector<1x32x288xf32>
    %1 = vector.shape_cast %0 : vector<1x32x288xf32> to vector<32x288xf32>
    %c0_1 = arith.constant 0 : index
    %c0_2 = arith.constant 0 : index
    %2 = vector.load %arg2[%c0_1, %c0_2] : memref<8x32xf32, #tpu.memory_space<vmem>>, vector<8x32xf32>
    %cst = arith.constant dense<0.000000e+00> : vector<8x288xf32>
    %3 = tpu.matmul %2, %1, %cst {dimension_numbers = #tpu.dot_dimension_numbers<[1], [0], [0], [1], [0, 0, 1, 1], [], []>} : vector<8x32xf32>, vector<32x288xf32>, vector<8x288xf32> -> vector<8x288xf32>
    %c0_3 = arith.constant 0 : index
    %c0_4 = arith.constant 0 : index
    %4 = vector.load %arg3[%c0_3, %c0_4] : memref<8x1xf32, #tpu.memory_space<vmem>>, vector<8x1xf32>
    %5 = vector.broadcast %4 : vector<8x1xf32> to vector<8x288xf32>
    %6 = arith.addf %3, %5 : vector<8x288xf32>
    %cst_5 = arith.constant 0.000000e+00 : f32
    %7 = vector.broadcast %cst_5 : f32 to vector<8x288xf32>
    %8 = arith.maximumf %6, %7 : vector<8x288xf32>
    %c0_6 = arith.constant 0 : index
    %c0_7 = arith.constant 0 : index
    %9 = vector.load %arg4[%c0_6, %c0_7] : memref<18x8xf32, #tpu.memory_space<vmem>>, vector<18x8xf32>
    %cst_8 = arith.constant dense<0.000000e+00> : vector<18x288xf32>
    %10 = tpu.matmul %9, %8, %cst_8 {dimension_numbers = #tpu.dot_dimension_numbers<[1], [0], [0], [1], [0, 0, 1, 1], [], []>} : vector<18x8xf32>, vector<8x288xf32>, vector<18x288xf32> -> vector<18x288xf32>
    %c0_9 = arith.constant 0 : index
    %c0_10 = arith.constant 0 : index
    %11 = vector.load %arg5[%c0_9, %c0_10] : memref<18x1xf32, #tpu.memory_space<vmem>>, vector<18x1xf32>
    %12 = vector.broadcast %11 : vector<18x1xf32> to vector<18x288xf32>
    %13 = arith.addf %10, %12 : vector<18x288xf32>
    %c0_11 = arith.constant 0 : index
    %c0_12 = arith.constant 0 : index
    %14 = vector.load %arg7[%c0_11, %c0_12] : memref<18x288xf32, #tpu.memory_space<vmem>>, vector<18x288xf32>
    tpu.vector_store %arg7[%c0_11, %c0_12], %13 {strides = array<i32>} : memref<18x288xf32, #tpu.memory_space<vmem>>, vector<18x288xf32>,
    %cst_13 = arith.constant 0.000000e+00 : f32
    %15 = vector.broadcast %cst_13 : f32 to vector<16x288xf32>
    %c0_14 = arith.constant 0 : index
    %c0_15 = arith.constant 0 : index
    %16 = vector.load %arg7[%c0_14, %c0_15] : memref<18x288xf32, #tpu.memory_space<vmem>>, vector<1x288xf32>
    %c0_16 = arith.constant 0 : index
    %c0_17 = arith.constant 0 : index
    %c0_18 = arith.constant 0 : index
    %17 = vector.load %arg1[%c0_16, %c0_17, %c0_18] : memref<1x32x342xf32, #tpu.memory_space<vmem>>, vector<1x16x288xf32>
    %18 = vector.shape_cast %17 : vector<1x16x288xf32> to vector<16x288xf32>
    %19 = vector.broadcast %16 : vector<1x288xf32> to vector<16x288xf32>
    %20 = arith.mulf %19, %18 : vector<16x288xf32>
    %21 = arith.addf %15, %20 : vector<16x288xf32>
    %c1 = arith.constant 1 : index
    %c0_19 = arith.constant 0 : index
    %22 = vector.load %arg7[%c1, %c0_19] : memref<18x288xf32, #tpu.memory_space<vmem>>, vector<1x288xf32>
    %c0_20 = arith.constant 0 : index
    %c0_21 = arith.constant 0 : index
    %c1_22 = arith.constant 1 : index
    %23 = vector.load %arg1[%c0_20, %c0_21, %c1_22] : memref<1x32x342xf32, #tpu.memory_space<vmem>>, vector<1x16x288xf32>
    %24 = vector.shape_cast %23 : vector<1x16x288xf32> to vector<16x288xf32>
    %25 = vector.broadcast %22 : vector<1x288xf32> to vector<16x288xf32>
    %26 = arith.mulf %25, %24 : vector<16x288xf32>
    %27 = arith.addf %21, %26 : vector<16x288xf32>
    %c2 = arith.constant 2 : index
    %c0_23 = arith.constant 0 : index
    %28 = vector.load %arg7[%c2, %c0_23] : memref<18x288xf32, #tpu.memory_space<vmem>>, vector<1x288xf32>
    %c0_24 = arith.constant 0 : index
    %c0_25 = arith.constant 0 : index
    %c2_26 = arith.constant 2 : index
    %29 = vector.load %arg1[%c0_24, %c0_25, %c2_26] : memref<1x32x342xf32, #tpu.memory_space<vmem>>, vector<1x16x288xf32>
    %30 = vector.shape_cast %29 : vector<1x16x288xf32> to vector<16x288xf32>
    %31 = vector.broadcast %28 : vector<1x288xf32> to vector<16x288xf32>
    %32 = arith.mulf %31, %30 : vector<16x288xf32>
    %33 = arith.addf %27, %32 : vector<16x288xf32>
    %c3 = arith.constant 3 : index
    %c0_27 = arith.constant 0 : index
    %34 = vector.load %arg7[%c3, %c0_27] : memref<18x288xf32, #tpu.memory_space<vmem>>, vector<1x288xf32>
    %c0_28 = arith.constant 0 : index
    %c0_29 = arith.constant 0 : index
    %c18 = arith.constant 18 : index
    %35 = vector.load %arg1[%c0_28, %c0_29, %c18] : memref<1x32x342xf32, #tpu.memory_space<vmem>>, vector<1x16x288xf32>
    %36 = vector.shape_cast %35 : vector<1x16x288xf32> to vector<16x288xf32>
    %37 = vector.broadcast %34 : vector<1x288xf32> to vector<16x288xf32>
    %38 = arith.mulf %37, %36 : vector<16x288xf32>
    %39 = arith.addf %33, %38 : vector<16x288xf32>
    %c4 = arith.constant 4 : index
    %c0_30 = arith.constant 0 : index
    %40 = vector.load %arg7[%c4, %c0_30] : memref<18x288xf32, #tpu.memory_space<vmem>>, vector<1x288xf32>
    %c0_31 = arith.constant 0 : index
    %c0_32 = arith.constant 0 : index
    %c19_33 = arith.constant 19 : index
    %41 = vector.load %arg1[%c0_31, %c0_32, %c19_33] : memref<1x32x342xf32, #tpu.memory_space<vmem>>, vector<1x16x288xf32>
    %42 = vector.shape_cast %41 : vector<1x16x288xf32> to vector<16x288xf32>
    %43 = vector.broadcast %40 : vector<1x288xf32> to vector<16x288xf32>
    %44 = arith.mulf %43, %42 : vector<16x288xf32>
    %45 = arith.addf %39, %44 : vector<16x288xf32>
    %c5 = arith.constant 5 : index
    %c0_34 = arith.constant 0 : index
    %46 = vector.load %arg7[%c5, %c0_34] : memref<18x288xf32, #tpu.memory_space<vmem>>, vector<1x288xf32>
    %c0_35 = arith.constant 0 : index
    %c0_36 = arith.constant 0 : index
    %c20 = arith.constant 20 : index
    %47 = vector.load %arg1[%c0_35, %c0_36, %c20] : memref<1x32x342xf32, #tpu.memory_space<vmem>>, vector<1x16x288xf32>
    %48 = vector.shape_cast %47 : vector<1x16x288xf32> to vector<16x288xf32>
    %49 = vector.broadcast %46 : vector<1x288xf32> to vector<16x288xf32>
    %50 = arith.mulf %49, %48 : vector<16x288xf32>
    %51 = arith.addf %45, %50 : vector<16x288xf32>
    %c6 = arith.constant 6 : index
    %c0_37 = arith.constant 0 : index
    %52 = vector.load %arg7[%c6, %c0_37] : memref<18x288xf32, #tpu.memory_space<vmem>>, vector<1x288xf32>
    %c0_38 = arith.constant 0 : index
    %c0_39 = arith.constant 0 : index
    %c36 = arith.constant 36 : index
    %53 = vector.load %arg1[%c0_38, %c0_39, %c36] : memref<1x32x342xf32, #tpu.memory_space<vmem>>, vector<1x16x288xf32>
    %54 = vector.shape_cast %53 : vector<1x16x288xf32> to vector<16x288xf32>
    %55 = vector.broadcast %52 : vector<1x288xf32> to vector<16x288xf32>
    %56 = arith.mulf %55, %54 : vector<16x288xf32>
    %57 = arith.addf %51, %56 : vector<16x288xf32>
    %c7 = arith.constant 7 : index
    %c0_40 = arith.constant 0 : index
    %58 = vector.load %arg7[%c7, %c0_40] : memref<18x288xf32, #tpu.memory_space<vmem>>, vector<1x288xf32>
    %c0_41 = arith.constant 0 : index
    %c0_42 = arith.constant 0 : index
    %c37 = arith.constant 37 : index
    %59 = vector.load %arg1[%c0_41, %c0_42, %c37] : memref<1x32x342xf32, #tpu.memory_space<vmem>>, vector<1x16x288xf32>
    %60 = vector.shape_cast %59 : vector<1x16x288xf32> to vector<16x288xf32>
    %61 = vector.broadcast %58 : vector<1x288xf32> to vector<16x288xf32>
    %62 = arith.mulf %61, %60 : vector<16x288xf32>
    %63 = arith.addf %57, %62 : vector<16x288xf32>
    %c8 = arith.constant 8 : index
    %c0_43 = arith.constant 0 : index
    %64 = vector.load %arg7[%c8, %c0_43] : memref<18x288xf32, #tpu.memory_space<vmem>>, vector<1x288xf32>
    %c0_44 = arith.constant 0 : index
    %c0_45 = arith.constant 0 : index
    %c38 = arith.constant 38 : index
    %65 = vector.load %arg1[%c0_44, %c0_45, %c38] : memref<1x32x342xf32, #tpu.memory_space<vmem>>, vector<1x16x288xf32>
    %66 = vector.shape_cast %65 : vector<1x16x288xf32> to vector<16x288xf32>
    %67 = vector.broadcast %64 : vector<1x288xf32> to vector<16x288xf32>
    %68 = arith.mulf %67, %66 : vector<16x288xf32>
    %69 = arith.addf %63, %68 : vector<16x288xf32>
    %c0_46 = arith.constant 0 : index
    %c0_47 = arith.constant 0 : index
    %c0_48 = arith.constant 0 : index
    %70 = vector.load %arg6[%c0_46, %c0_47, %c0_48] : memref<1x32x288xf32, #tpu.memory_space<vmem>>, vector<1x16x288xf32>
    %71 = vector.shape_cast %70 : vector<1x16x288xf32> to vector<16x288xf32>
    %72 = vector.shape_cast %69 : vector<16x288xf32> to vector<1x16x288xf32>
    tpu.vector_store %arg6[%c0_46, %c0_47, %c0_48], %72 {strides = array<i32>} : memref<1x32x288xf32, #tpu.memory_space<vmem>>, vector<1x16x288xf32>,
    %cst_49 = arith.constant 0.000000e+00 : f32
    %73 = vector.broadcast %cst_49 : f32 to vector<16x288xf32>
    %c9 = arith.constant 9 : index
    %c0_50 = arith.constant 0 : index
    %74 = vector.load %arg7[%c9, %c0_50] : memref<18x288xf32, #tpu.memory_space<vmem>>, vector<1x288xf32>
    %c0_51 = arith.constant 0 : index
    %c16 = arith.constant 16 : index
    %c0_52 = arith.constant 0 : index
    %75 = vector.load %arg1[%c0_51, %c16, %c0_52] : memref<1x32x342xf32, #tpu.memory_space<vmem>>, vector<1x16x288xf32>
    %76 = vector.shape_cast %75 : vector<1x16x288xf32> to vector<16x288xf32>
    %77 = vector.broadcast %74 : vector<1x288xf32> to vector<16x288xf32>
    %78 = arith.mulf %77, %76 : vector<16x288xf32>
    %79 = arith.addf %73, %78 : vector<16x288xf32>
    %c10 = arith.constant 10 : index
    %c0_53 = arith.constant 0 : index
    %80 = vector.load %arg7[%c10, %c0_53] : memref<18x288xf32, #tpu.memory_space<vmem>>, vector<1x288xf32>
    %c0_54 = arith.constant 0 : index
    %c16_55 = arith.constant 16 : index
    %c1_56 = arith.constant 1 : index
    %81 = vector.load %arg1[%c0_54, %c16_55, %c1_56] : memref<1x32x342xf32, #tpu.memory_space<vmem>>, vector<1x16x288xf32>
    %82 = vector.shape_cast %81 : vector<1x16x288xf32> to vector<16x288xf32>
    %83 = vector.broadcast %80 : vector<1x288xf32> to vector<16x288xf32>
    %84 = arith.mulf %83, %82 : vector<16x288xf32>
    %85 = arith.addf %79, %84 : vector<16x288xf32>
    %c11 = arith.constant 11 : index
    %c0_57 = arith.constant 0 : index
    %86 = vector.load %arg7[%c11, %c0_57] : memref<18x288xf32, #tpu.memory_space<vmem>>, vector<1x288xf32>
    %c0_58 = arith.constant 0 : index
    %c16_59 = arith.constant 16 : index
    %c2_60 = arith.constant 2 : index
    %87 = vector.load %arg1[%c0_58, %c16_59, %c2_60] : memref<1x32x342xf32, #tpu.memory_space<vmem>>, vector<1x16x288xf32>
    %88 = vector.shape_cast %87 : vector<1x16x288xf32> to vector<16x288xf32>
    %89 = vector.broadcast %86 : vector<1x288xf32> to vector<16x288xf32>
    %90 = arith.mulf %89, %88 : vector<16x288xf32>
    %91 = arith.addf %85, %90 : vector<16x288xf32>
    %c12 = arith.constant 12 : index
    %c0_61 = arith.constant 0 : index
    %92 = vector.load %arg7[%c12, %c0_61] : memref<18x288xf32, #tpu.memory_space<vmem>>, vector<1x288xf32>
    %c0_62 = arith.constant 0 : index
    %c16_63 = arith.constant 16 : index
    %c18_64 = arith.constant 18 : index
    %93 = vector.load %arg1[%c0_62, %c16_63, %c18_64] : memref<1x32x342xf32, #tpu.memory_space<vmem>>, vector<1x16x288xf32>
    %94 = vector.shape_cast %93 : vector<1x16x288xf32> to vector<16x288xf32>
    %95 = vector.broadcast %92 : vector<1x288xf32> to vector<16x288xf32>
    %96 = arith.mulf %95, %94 : vector<16x288xf32>
    %97 = arith.addf %91, %96 : vector<16x288xf32>
    %c13 = arith.constant 13 : index
    %c0_65 = arith.constant 0 : index
    %98 = vector.load %arg7[%c13, %c0_65] : memref<18x288xf32, #tpu.memory_space<vmem>>, vector<1x288xf32>
    %c0_66 = arith.constant 0 : index
    %c16_67 = arith.constant 16 : index
    %c19_68 = arith.constant 19 : index
    %99 = vector.load %arg1[%c0_66, %c16_67, %c19_68] : memref<1x32x342xf32, #tpu.memory_space<vmem>>, vector<1x16x288xf32>
    %100 = vector.shape_cast %99 : vector<1x16x288xf32> to vector<16x288xf32>
    %101 = vector.broadcast %98 : vector<1x288xf32> to vector<16x288xf32>
    %102 = arith.mulf %101, %100 : vector<16x288xf32>
    %103 = arith.addf %97, %102 : vector<16x288xf32>
    %c14 = arith.constant 14 : index
    %c0_69 = arith.constant 0 : index
    %104 = vector.load %arg7[%c14, %c0_69] : memref<18x288xf32, #tpu.memory_space<vmem>>, vector<1x288xf32>
    %c0_70 = arith.constant 0 : index
    %c16_71 = arith.constant 16 : index
    %c20_72 = arith.constant 20 : index
    %105 = vector.load %arg1[%c0_70, %c16_71, %c20_72] : memref<1x32x342xf32, #tpu.memory_space<vmem>>, vector<1x16x288xf32>
    %106 = vector.shape_cast %105 : vector<1x16x288xf32> to vector<16x288xf32>
    %107 = vector.broadcast %104 : vector<1x288xf32> to vector<16x288xf32>
    %108 = arith.mulf %107, %106 : vector<16x288xf32>
    %109 = arith.addf %103, %108 : vector<16x288xf32>
    %c15 = arith.constant 15 : index
    %c0_73 = arith.constant 0 : index
    %110 = vector.load %arg7[%c15, %c0_73] : memref<18x288xf32, #tpu.memory_space<vmem>>, vector<1x288xf32>
    %c0_74 = arith.constant 0 : index
    %c16_75 = arith.constant 16 : index
    %c36_76 = arith.constant 36 : index
    %111 = vector.load %arg1[%c0_74, %c16_75, %c36_76] : memref<1x32x342xf32, #tpu.memory_space<vmem>>, vector<1x16x288xf32>
    %112 = vector.shape_cast %111 : vector<1x16x288xf32> to vector<16x288xf32>
    %113 = vector.broadcast %110 : vector<1x288xf32> to vector<16x288xf32>
    %114 = arith.mulf %113, %112 : vector<16x288xf32>
    %115 = arith.addf %109, %114 : vector<16x288xf32>
    %c16_77 = arith.constant 16 : index
    %c0_78 = arith.constant 0 : index
    %116 = vector.load %arg7[%c16_77, %c0_78] : memref<18x288xf32, #tpu.memory_space<vmem>>, vector<1x288xf32>
    %c0_79 = arith.constant 0 : index
    %c16_80 = arith.constant 16 : index
    %c37_81 = arith.constant 37 : index
    %117 = vector.load %arg1[%c0_79, %c16_80, %c37_81] : memref<1x32x342xf32, #tpu.memory_space<vmem>>, vector<1x16x288xf32>
    %118 = vector.shape_cast %117 : vector<1x16x288xf32> to vector<16x288xf32>
    %119 = vector.broadcast %116 : vector<1x288xf32> to vector<16x288xf32>
    %120 = arith.mulf %119, %118 : vector<16x288xf32>
    %121 = arith.addf %115, %120 : vector<16x288xf32>
    %c17 = arith.constant 17 : index
    %c0_82 = arith.constant 0 : index
    %122 = vector.load %arg7[%c17, %c0_82] : memref<18x288xf32, #tpu.memory_space<vmem>>, vector<1x288xf32>
    %c0_83 = arith.constant 0 : index
    %c16_84 = arith.constant 16 : index
    %c38_85 = arith.constant 38 : index
    %123 = vector.load %arg1[%c0_83, %c16_84, %c38_85] : memref<1x32x342xf32, #tpu.memory_space<vmem>>, vector<1x16x288xf32>
    %124 = vector.shape_cast %123 : vector<1x16x288xf32> to vector<16x288xf32>
    %125 = vector.broadcast %122 : vector<1x288xf32> to vector<16x288xf32>
    %126 = arith.mulf %125, %124 : vector<16x288xf32>
    %127 = arith.addf %121, %126 : vector<16x288xf32>
    %c0_86 = arith.constant 0 : index
    %c16_87 = arith.constant 16 : index
    %c0_88 = arith.constant 0 : index
    %128 = vector.load %arg6[%c0_86, %c16_87, %c0_88] : memref<1x32x288xf32, #tpu.memory_space<vmem>>, vector<1x16x288xf32>
    %129 = vector.shape_cast %128 : vector<1x16x288xf32> to vector<16x288xf32>
    %130 = vector.shape_cast %127 : vector<16x288xf32> to vector<1x16x288xf32>
    tpu.vector_store %arg6[%c0_86, %c16_87, %c0_88], %130 {strides = array<i32>} : memref<1x32x288xf32, #tpu.memory_space<vmem>>, vector<1x16x288xf32>,
    return
  }
  func.func @transform_0(%arg0: i32) -> (i32, i32, i32) {
    %c0_i32 = arith.constant 0 : i32
    %c0_i32_0 = arith.constant 0 : i32
    %c0_i32_1 = arith.constant 0 : i32
    return %arg0, %c0_i32, %c0_i32_0 : i32, i32, i32
  }
  func.func @transform_1(%arg0: i32) -> (i32, i32) {
    %c0_i32 = arith.constant 0 : i32
    %c0_i32_0 = arith.constant 0 : i32
    %c0_i32_1 = arith.constant 0 : i32
    return %c0_i32, %c0_i32_0 : i32, i32
  }
  func.func @transform_2(%arg0: i32) -> (i32, i32) {
    %c0_i32 = arith.constant 0 : i32
    %c0_i32_0 = arith.constant 0 : i32
    %c0_i32_1 = arith.constant 0 : i32
    return %c0_i32, %c0_i32_0 : i32, i32
  }
  func.func @transform_3(%arg0: i32) -> (i32, i32) {
    %c0_i32 = arith.constant 0 : i32
    %c0_i32_0 = arith.constant 0 : i32
    %c0_i32_1 = arith.constant 0 : i32
    return %c0_i32, %c0_i32_0 : i32, i32
  }
  func.func @transform_4(%arg0: i32) -> (i32, i32) {
    %c0_i32 = arith.constant 0 : i32
    %c0_i32_0 = arith.constant 0 : i32
    %c0_i32_1 = arith.constant 0 : i32
    return %c0_i32, %c0_i32_0 : i32, i32
  }
  func.func @transform_5(%arg0: i32) -> (i32, i32, i32) {
    %c0_i32 = arith.constant 0 : i32
    %c0_i32_0 = arith.constant 0 : i32
    %c0_i32_1 = arith.constant 0 : i32
    return %arg0, %c0_i32, %c0_i32_0 : i32, i32, i32
  }
}

</mosaic_0001>

<llo_original>
// kernel: tpu_custom_call.1
$region0: #{tpu_custom_call.1}
  #allocation0 [shape = 'u32[]', space=smem, size = 0x4, offset = 0x4, fixed_abs, tag = 'smem constant byte address 0x4 - core index']
  #allocation1 [shape = 'u32[72,128]{1,0:T(1,128)}', space=vmem, size = 0x9000, scoped, tag = 'internal scratch']
  #allocation2 [shape = 'f32[18,288]{1,0:T(8,128)}', space=vmem, size = 0x9000, scoped, tag = 'scratch operand']
  %s0 = inlined_call_operand.hbm [shape: f32[2,32,342], index: 0, kind: input, shape index: {}]
  %s1 = inlined_call_operand.vmem [shape: f32[8,32], index: 1, kind: input, shape index: {}]
  %s2 = inlined_call_operand.vmem [shape: f32[8,1], index: 2, kind: input, shape index: {}]
  %s3 = inlined_call_operand.vmem [shape: f32[18,8], index: 3, kind: input, shape index: {}]
  %s4 = inlined_call_operand.vmem [shape: f32[18,1], index: 4, kind: input, shape index: {}]
  %s5 = inlined_call_operand.hbm [shape: f32[2,32,288], index: 5, kind: output, shape index: {}]
  %s6 = sld [smem:[#allocation0]]
  $region57: #{tpu_custom_call.1} parent=0
    _
  %s8 = ssub.s32 1, %s6
  %s9 = scalar_select 0, %s8, %s6
  $region1: #{tpu_custom_call.1} parent=0
    #allocation3 [shape = 'u8[98304]{0}', space=vmem, size = 0x18000, scoped, tag = 'input window, operand 0']
    #allocation4 [shape = 's32[2]{0}', space=sflag, size = 0x8, scoped, tag = 'scoped memory for tpu_custom_call.1']
    #allocation5 [shape = 's32[2]{0}', space=sflag, size = 0x8, scoped, tag = 'scoped memory for tpu_custom_call.1']
    #allocation6 [shape = 'u8[98304]{0}', space=vmem, size = 0x18000, scoped, tag = 'output window, operand 0']
    %10 = vsyncpa [#allocation4], 0
    %s11 = scalar_lea.sflag [#allocation4], 1
    %12 = vsyncpa %s11, 0
    %13 = vsyncpa [#allocation5], 0
    %s14 = scalar_lea.sflag [#allocation5], 1
    %15 = vsyncpa %s14, 0
    loop: start=0, step=1, limit=4
    $region2: #{tpu_custom_call.1} parent=1 // loop_pre_header
      _
    $region3: #{tpu_custom_call.1} parent=1 // loop_header
      %s17 = sphi 0, %s21
      %p18 = scmp.ge.s32.totalorder %s17, 4
      %s27 = sphi 0, %s29
      %s30 = sphi 0, %s27
      %s31 = sphi 0, %s30
      %s47 = sphi 0, %s31
      %s51 = sphi 0, %s51
      %s53 = sphi 0, %s51
      %s54 = sphi 0, %s53
      %s68 = sphi 0, %s54
      %s72 = sphi 0, %s72
      %s74 = sphi 0, %s72
      %s75 = sphi 0, %s74
      %s89 = sphi 0, %s75
      %s93 = sphi 0, %s93
      %s95 = sphi 0, %s93
      %s96 = sphi 0, %s95
      %s110 = sphi 0, %s96
      %s114 = sphi 0, %s114
      %s116 = sphi 0, %s114
      %s117 = sphi 0, %s116
      %s131 = sphi 0, %s117
      %s137 = sphi 0, %s139
      %s140 = sphi 0, %s137
      %s141 = sphi 0, %s140
      %s157 = sphi 0, %s141
    $region4: #{tpu_custom_call.1} parent=1 // loop_header_branch
      %20 = sbr.rel (%p18) target = $region8
    $region5: #{tpu_custom_call.1} parent=1 // loop_body
      %s22 = ssub.s32 %s17, 1
      %s23 = ssub.s32 %s17, 2
      %s24 = sadd.s32 %s17, 1
      %s25 = ssub.s32 %s17, %s24
      %p26 = scmp.eq.s32.totalorder %s25, 0
      %s28 = sadd.s32 %s27, 1
      %s29 = scalar_select %p26, %s27, %s28
      %p32 = pneg %p26
      %p33 = scmp.eq.s32.totalorder %s17, 1
      %p34 = por %p32, %p33
      %p35 = scmp.ne.s32.totalorder %s27, %s30
      %p36 = scmp.eq.s32.totalorder %s17, 0
      %p37 = por %p35, %p36
      %p38 = scmp.ne.s32.totalorder %s27, %s30
      %p39 = scmp.eq.s32.totalorder %s22, 1
      %p40 = por %p38, %p39
      %p41 = scmp.ne.s32.totalorder %s30, %s31
      %p42 = scmp.eq.s32.totalorder %s22, 0
      %p43 = por %p41, %p42
      %p44 = scmp.ne.s32.totalorder %s30, %s31
      %p45 = scmp.eq.s32.totalorder %s23, 1
      %p46 = por %p44, %p45
      %p48 = scmp.ne.s32.totalorder %s31, %s47
      %p49 = scmp.eq.s32.totalorder %s23, 0
      %p50 = por %p48, %p49
      %s52 = sadd.s32 %s51, 1
      %p55 = scmp.eq.s32.totalorder %s17, 1
      %p56 = scmp.ne.s32.totalorder %s51, %s53
      %p57 = scmp.eq.s32.totalorder %s17, 0
      %p58 = por %p56, %p57
      %p59 = scmp.ne.s32.totalorder %s51, %s53
      %p60 = scmp.eq.s32.totalorder %s22, 1
      %p61 = por %p59, %p60
      %p62 = scmp.ne.s32.totalorder %s53, %s54
      %p63 = scmp.eq.s32.totalorder %s22, 0
      %p64 = por %p62, %p63
      %p65 = scmp.ne.s32.totalorder %s53, %s54
      %p66 = scmp.eq.s32.totalorder %s23, 1
      %p67 = por %p65, %p66
      %p69 = scmp.ne.s32.totalorder %s54, %s68
      %p70 = scmp.eq.s32.totalorder %s23, 0
      %p71 = por %p69, %p70
      %s73 = sadd.s32 %s72, 1
      %p76 = scmp.eq.s32.totalorder %s17, 1
      %p77 = scmp.ne.s32.totalorder %s72, %s74
      %p78 = scmp.eq.s32.totalorder %s17, 0
      %p79 = por %p77, %p78
      %p80 = scmp.ne.s32.totalorder %s72, %s74
      %p81 = scmp.eq.s32.totalorder %s22, 1
      %p82 = por %p80, %p81
      %p83 = scmp.ne.s32.totalorder %s74, %s75
      %p84 = scmp.eq.s32.totalorder %s22, 0
      %p85 = por %p83, %p84
      %p86 = scmp.ne.s32.totalorder %s74, %s75
      %p87 = scmp.eq.s32.totalorder %s23, 1
      %p88 = por %p86, %p87
      %p90 = scmp.ne.s32.totalorder %s75, %s89
      %p91 = scmp.eq.s32.totalorder %s23, 0
      %p92 = por %p90, %p91
      %s94 = sadd.s32 %s93, 1
      %p97 = scmp.eq.s32.totalorder %s17, 1
      %p98 = scmp.ne.s32.totalorder %s93, %s95
      %p99 = scmp.eq.s32.totalorder %s17, 0
      %p100 = por %p98, %p99
      %p101 = scmp.ne.s32.totalorder %s93, %s95
      %p102 = scmp.eq.s32.totalorder %s22, 1
      %p103 = por %p101, %p102
      %p104 = scmp.ne.s32.totalorder %s95, %s96
      %p105 = scmp.eq.s32.totalorder %s22, 0
      %p106 = por %p104, %p105
      %p107 = scmp.ne.s32.totalorder %s95, %s96
      %p108 = scmp.eq.s32.totalorder %s23, 1
      %p109 = por %p107, %p108
      %p111 = scmp.ne.s32.totalorder %s96, %s110
      %p112 = scmp.eq.s32.totalorder %s23, 0
      %p113 = por %p111, %p112
      %s115 = sadd.s32 %s114, 1
      %p118 = scmp.eq.s32.totalorder %s17, 1
      %p119 = scmp.ne.s32.totalorder %s114, %s116
      %p120 = scmp.eq.s32.totalorder %s17, 0
      %p121 = por %p119, %p120
      %p122 = scmp.ne.s32.totalorder %s114, %s116
      %p123 = scmp.eq.s32.totalorder %s22, 1
      %p124 = por %p122, %p123
      %p125 = scmp.ne.s32.totalorder %s116, %s117
      %p126 = scmp.eq.s32.totalorder %s22, 0
      %p127 = por %p125, %p126
      %p128 = scmp.ne.s32.totalorder %s116, %s117
      %p129 = scmp.eq.s32.totalorder %s23, 1
      %p130 = por %p128, %p129
      %p132 = scmp.ne.s32.totalorder %s117, %s131
      %p133 = scmp.eq.s32.totalorder %s23, 0
      %p134 = por %p132, %p133
      %s135 = ssub.s32 %s17, %s24
      %p136 = scmp.eq.s32.totalorder %s135, 0
      %s138 = sadd.s32 %s137, 1
      %s139 = scalar_select %p136, %s137, %s138
      %p142 = pneg %p136
      %p143 = scmp.eq.s32.totalorder %s17, 1
      %p144 = por %p142, %p143
      %p145 = scmp.ne.s32.totalorder %s137, %s140
      %p146 = scmp.eq.s32.totalorder %s17, 0
      %p147 = por %p145, %p146
      %p148 = scmp.ne.s32.totalorder %s137, %s140
      %p149 = scmp.eq.s32.totalorder %s22, 1
      %p150 = por %p148, %p149
      %p151 = scmp.ne.s32.totalorder %s140, %s141
      %p152 = scmp.eq.s32.totalorder %s22, 0
      %p153 = por %p151, %p152
      %p154 = scmp.ne.s32.totalorder %s140, %s141
      %p155 = scmp.eq.s32.totalorder %s23, 1
      %p156 = por %p154, %p155
      %p158 = scmp.ne.s32.totalorder %s141, %s157
      %p159 = scmp.eq.s32.totalorder %s23, 0
      %p160 = por %p158, %p159
      %p161 = scmp.le.s32.totalorder 1, %s17
      %p162 = scmp.lt.s32.totalorder %s17, 3
      %p163 = pnand %p161, %p162
      %p164 = pneg %p163
      // Predicated region
      $region9: #{tpu_custom_call.1} parent=5 // pred_check
        _
      $region10: #{tpu_custom_call.1} parent=5 // pred_check_branch
        %166 = sbr.rel (%p163) target = $region12
      $region11: #{tpu_custom_call.1} parent=5 // pred_region
        %s167 = ssub.s32 %s17, 1
        // Predicated region
        $region13: #{tpu_custom_call.1} parent=11 // pred_check
          %p168 = pneg %p64
        $region14: #{tpu_custom_call.1} parent=11 // pred_check_branch
          %170 = sbr.rel (%p168) target = $region16
        $region15: #{tpu_custom_call.1} parent=11 // pred_region
          _
        $region16: #{tpu_custom_call.1} parent=11 // pred_fallthru
          _
        // Predicated region
        $region17: #{tpu_custom_call.1} parent=11 // pred_check
          %p171 = pneg %p85
        $region18: #{tpu_custom_call.1} parent=11 // pred_check_branch
          %173 = sbr.rel (%p171) target = $region20
        $region19: #{tpu_custom_call.1} parent=11 // pred_region
          _
        $region20: #{tpu_custom_call.1} parent=11 // pred_fallthru
          _
        // Predicated region
        $region21: #{tpu_custom_call.1} parent=11 // pred_check
          %p174 = pneg %p106
        $region22: #{tpu_custom_call.1} parent=11 // pred_check_branch
          %176 = sbr.rel (%p174) target = $region24
        $region23: #{tpu_custom_call.1} parent=11 // pred_region
          _
        $region24: #{tpu_custom_call.1} parent=11 // pred_fallthru
          _
        // Predicated region
        $region25: #{tpu_custom_call.1} parent=11 // pred_check
          %p177 = pneg %p127
        $region26: #{tpu_custom_call.1} parent=11 // pred_check_branch
          %179 = sbr.rel (%p177) target = $region28
        $region27: #{tpu_custom_call.1} parent=11 // pred_region
          _
        $region28: #{tpu_custom_call.1} parent=11 // pred_fallthru
          _
      $region12: #{tpu_custom_call.1} parent=5 // pred_fallthru
        _
      %p180 = scmp.lt.s32.totalorder %s17, 2
      // Predicated region
      $region29: #{tpu_custom_call.1} parent=5 // pred_check
        %p181 = pneg %p180
      $region30: #{tpu_custom_call.1} parent=5 // pred_check_branch
        %183 = sbr.rel (%p181) target = $region32
      $region31: #{tpu_custom_call.1} parent=5 // pred_region
        // Predicated region
        $region33: #{tpu_custom_call.1} parent=31 // pred_check
          %p184 = pneg %p37
        $region34: #{tpu_custom_call.1} parent=31 // pred_check_branch
          %186 = sbr.rel (%p184) target = $region36
        $region35: #{tpu_custom_call.1} parent=31 // pred_region
          %s187 = sand.u32 %s27, 1
          %s188 = scalar_lea.sflag [#allocation4], %s187
          %s189 = sand.u32 %s27, 1
          %s190 = smul.addr %s189, 96
          %s191 = scalar_lea.vmem [#allocation3], %s190
          %193 = vsyncadd %s188, 0
          %s194 = smul.addr %s17, 12
          %s195 = smul.addr %s194, 8
          %s196 = scalar_lea.hbm %s0, %s195
          %s197 = sshll.u32 %s196, 4
          %s198 = int_to_ptr.hbm [resolvable:$true] %s197
          %s199 = sshll.u32 %s191, 4
          %s200 = int_to_ptr.vmem [resolvable:$true] %s199
          %205 = dma.hbm_to_vmem [thread:$0]  %s198, 1536, %s200, %s188, 384, 384, 24
        $region36: #{tpu_custom_call.1} parent=31 // pred_fallthru
          _
      $region32: #{tpu_custom_call.1} parent=5 // pred_fallthru
        _
      %p206 = scmp.le.s32.totalorder 1, %s17
      %p207 = scmp.lt.s32.totalorder %s17, 3
      %p208 = pnand %p206, %p207
      %p209 = pneg %p208
      // Predicated region
      $region37: #{tpu_custom_call.1} parent=5 // pred_check
        _
      $region38: #{tpu_custom_call.1} parent=5 // pred_check_branch
        %211 = sbr.rel (%p208) target = $region40
      $region39: #{tpu_custom_call.1} parent=5 // pred_region
        %s212 = ssub.s32 %s17, 1
        %s213 = sand.u32 %s30, 1
        %s214 = scalar_lea.sflag [#allocation4], %s213
        %s215 = sand.u32 %s30, 1
        %s216 = smul.addr %s215, 96
        %s217 = scalar_lea.vmem [#allocation3], %s216
        // Predicated region
        $region41: #{tpu_custom_call.1} parent=39 // pred_check
          %p218 = pneg %p43
        $region42: #{tpu_custom_call.1} parent=39 // pred_check_branch
          %220 = sbr.rel (%p218) target = $region44
        $region43: #{tpu_custom_call.1} parent=39 // pred_region
          %222 = dma.done %s214, 1536
        $region44: #{tpu_custom_call.1} parent=39 // pred_fallthru
          _
        %s223 = sand.u32 %s30, 1
        %s224 = scalar_lea.sflag [#allocation4], %s223
        %s225 = sand.u32 %s30, 1
        %s226 = smul.addr %s225, 96
        %s227 = scalar_lea.vmem [#allocation3], %s226
        %p228 = pneg %p43
        %p229 = pneg %p40
        %p230 = pneg %p64
        %p231 = pneg %p61
        %p232 = pneg %p85
        %p233 = pneg %p82
        %p234 = pneg %p106
        %p235 = pneg %p103
        %p236 = pneg %p127
        %p237 = pneg %p124
        %p238 = pneg %p153
        %p239 = pneg %p150
        %s240 = sand.u32 %s140, 1
        %s241 = scalar_lea.sflag [#allocation5], %s240
        %s242 = sand.u32 %s140, 1
        %s243 = smul.addr %s242, 96
        %s244 = scalar_lea.vmem [#allocation6], %s243
        %v245 = vld [vmem:[%s217] sm:$0xff]
        %v246 = vld [vmem:[%s217 + $0x8] sm:$0xff]
        %v247 = vld [vmem:[%s217 + $0x10] sm:$0xff]
        %v248 = vld [vmem:[%s217 + $0x18] sm:$0xff]
        %v249 = vld [vmem:[%s217 + $0x20] sm:$0xff]
        %v250 = vld [vmem:[%s217 + $0x28] sm:$0xff]
        %v251 = vld [vmem:[%s217 + $0x30] sm:$0xff]
        %v252 = vld [vmem:[%s217 + $0x38] sm:$0xff]
        %v253 = vld [vmem:[%s217 + $0x40] sm:$0xff]
        %v254 = vld [vmem:[%s217 + $0x48] sm:$0xff]
        %v255 = vld [vmem:[%s217 + $0x50] sm:$0xff]
        %v256 = vld [vmem:[%s217 + $0x58] sm:$0xff]
        %v257 = vld [vmem:[%s1] sm:$0xff]
        %v258 = vld [vmem:[%s2] sm:$0xff]
        %260 = vset.pattern.permute.xlu0 0
        %261 = vperm.xlu0 %260, %v258
        %v262 = vpop.permute.xlu0 %261
        %276 = vrot.lane.b32.xlu0 %v245, 109
        %v277 = vpop.permute.xlu0 %276
        %278 = vrot.lane.b32.xlu0 %v246, 109
        %v279 = vpop.permute.xlu0 %278
        %280 = vrot.lane.b32.xlu0 %v247, 109
        %v281 = vpop.permute.xlu0 %280
        %282 = vrot.lane.b32.xlu0 %v248, 109
        %v283 = vpop.permute.xlu0 %282
        %284 = vrot.lane.b32.xlu0 %v249, 109
        %v285 = vpop.permute.xlu0 %284
        %286 = vrot.lane.b32.xlu0 %v250, 109
        %v287 = vpop.permute.xlu0 %286
        %288 = vrot.lane.b32.xlu0 %v251, 109
        %v289 = vpop.permute.xlu0 %288
        %290 = vrot.lane.b32.xlu0 %v252, 109
        %v291 = vpop.permute.xlu0 %290
        %292 = vrot.lane.b32.xlu0 %v253, 109
        %v293 = vpop.permute.xlu0 %292
        %294 = vrot.lane.b32.xlu0 %v254, 109
        %v295 = vpop.permute.xlu0 %294
        %296 = vrot.lane.b32.xlu0 %v255, 109
        %v297 = vpop.permute.xlu0 %296
        %298 = vrot.lane.b32.xlu0 %v256, 109
        %v299 = vpop.permute.xlu0 %298
        %vm300 = vcmask 891904
        %v301 = vsel %vm300, %v277, %v279
        %v302 = vsel %vm300, %v279, %v281
        %v303 = vsel %vm300, %v283, %v285
        %v304 = vsel %vm300, %v285, %v287
        %v305 = vsel %vm300, %v289, %v291
        %v306 = vsel %vm300, %v291, %v293
        %v307 = vsel %vm300, %v295, %v297
        %v308 = vsel %vm300, %v297, %v299
        %vm321 = vcmask 261120
        %v323 = vsel %vm321, %v257, 0
        %325 = vmatpush.msra.mxu0 0.0
        %326 = vmatpush.msra.mxu0 0.0
        %327 = vmatpush.msra.mxu0 0.0
        %328 = vmatpush.msra.mxu0 0.0
        %329 = vmatpush.msra.mxu0 0.0
        %330 = vmatpush.msra.mxu0 0.0
        %331 = vmatpush.msra.mxu0 0.0
        %332 = vmatpush.msra.mxu0 0.0
        %333 = vmatpush.msra.mxu0 0.0
        %334 = vmatpush.msra.mxu0 0.0
        %335 = vmatpush.msra.mxu0 0.0
        %336 = vmatpush.msra.mxu0 0.0
        %337 = vmatpush.msra.mxu0 %v307
        %338 = vmatpush.msra.mxu0 %v305
        %339 = vmatpush.msra.mxu0 %v303
        %340 = vmatpush.msra.mxu0 %v301
        %341 = vmatmul.f32.gmra.mxu0 %v323
        %v342 = vpop.f32.mrf.mxu0
        %v343 = vadd.f32 %v262, %v342
        %344 = vdwg.mxu0
        %345 = vmatpush.msra.mxu0 0.0
        %346 = vmatpush.msra.mxu0 0.0
        %347 = vmatpush.msra.mxu0 0.0
        %348 = vmatpush.msra.mxu0 0.0
        %349 = vmatpush.msra.mxu0 0.0
        %350 = vmatpush.msra.mxu0 0.0
        %351 = vmatpush.msra.mxu0 0.0
        %352 = vmatpush.msra.mxu0 0.0
        %353 = vmatpush.msra.mxu0 0.0
        %354 = vmatpush.msra.mxu0 0.0
        %355 = vmatpush.msra.mxu0 0.0
        %356 = vmatpush.msra.mxu0 0.0
        %357 = vmatpush.msra.mxu0 %v308
        %358 = vmatpush.msra.mxu0 %v306
        %359 = vmatpush.msra.mxu0 %v304
        %360 = vmatpush.msra.mxu0 %v302
        %361 = vmatmul.f32.gmra.mxu0 %v323
        %v362 = vpop.f32.mrf.mxu0
        %v363 = vadd.f32 %v262, %v362
        %364 = vdwg.mxu0
        %365 = vmatpush.msra.mxu0 0.0
        %366 = vmatpush.msra.mxu0 0.0
        %367 = vmatpush.msra.mxu0 0.0
        %368 = vmatpush.msra.mxu0 0.0
        %369 = vmatpush.msra.mxu0 0.0
        %370 = vmatpush.msra.mxu0 0.0
        %371 = vmatpush.msra.mxu0 0.0
        %372 = vmatpush.msra.mxu0 0.0
        %373 = vmatpush.msra.mxu0 0.0
        %374 = vmatpush.msra.mxu0 0.0
        %375 = vmatpush.msra.mxu0 0.0
        %376 = vmatpush.msra.mxu0 0.0
        %377 = vmatpush.msra.mxu0 %v299
        %378 = vmatpush.msra.mxu0 %v293
        %379 = vmatpush.msra.mxu0 %v287
        %380 = vmatpush.msra.mxu0 %v281
        %381 = vmatmul.f32.gmra.mxu0 %v323
        %v382 = vpop.f32.mrf.mxu0
        %v383 = vadd.f32 %v262, %v382
        %384 = vdwg.mxu0
        %v385 = vmax.f32 %v343, 0.0
        %v386 = vmax.f32 %v363, 0.0
        %v387 = vmax.f32 %v383, 0.0
        %v388 = vld [vmem:[%s3] sm:$0xff]
        %v389 = vld [vmem:[%s3 + $0x8] sm:$0xff]
        %v390 = vld [vmem:[%s3 + $0x10] sm:$0x3]
        %v391 = vld [vmem:[%s4] sm:$0xff]
        %v392 = vld [vmem:[%s4 + $0x8] sm:$0xff]
        %v393 = vld [vmem:[%s4 + $0x10] sm:$0x3]
        %395 = vset.pattern.permute.xlu0 0
        %396 = vperm.xlu0 %395, %v391
        %v397 = vpop.permute.xlu0 %396
        %400 = vset.pattern.permute.xlu0 0
        %401 = vperm.xlu0 %400, %v392
        %v402 = vpop.permute.xlu0 %401
        %405 = vset.pattern.permute.xlu0 0
        %406 = vperm.xlu0 %405, %v393
        %v407 = vpop.permute.xlu0 %406
        %vm409 = vcmask 64512
        %v411 = vsel %vm409, %v388, 0
        %v414 = vsel %vm409, %v389, 0
        %v417 = vsel %vm409, %v390, 0
        %419 = vmatpush.msra.mxu0 0.0
        %420 = vmatpush.msra.mxu0 0.0
        %421 = vmatpush.msra.mxu0 0.0
        %422 = vmatpush.msra.mxu0 0.0
        %423 = vmatpush.msra.mxu0 0.0
        %424 = vmatpush.msra.mxu0 0.0
        %425 = vmatpush.msra.mxu0 0.0
        %426 = vmatpush.msra.mxu0 0.0
        %427 = vmatpush.msra.mxu0 0.0
        %428 = vmatpush.msra.mxu0 0.0
        %429 = vmatpush.msra.mxu0 0.0
        %430 = vmatpush.msra.mxu0 0.0
        %431 = vmatpush.msra.mxu0 0.0
        %432 = vmatpush.msra.mxu0 0.0
        %433 = vmatpush.msra.mxu0 0.0
        %434 = vmatpush.msra.mxu0 %v385
        %435 = vmatmul.f32.gmra.mxu0 %v411
        %v436 = vpop.f32.mrf.mxu0
        %v437 = vadd.f32 %v397, %v436
        %438 = vmatmul.f32.gmra.mxu0 %v414
        %v439 = vpop.f32.mrf.mxu0
        %v440 = vadd.f32 %v402, %v439
        %441 = vmatmul.f32.gmra.mxu0 %v417
        %v442 = vpop.f32.mrf.mxu0
        %v443 = vadd.f32 %v407, %v442
        %444 = vdwg.mxu0
        %445 = vmatpush.msra.mxu0 0.0
        %446 = vmatpush.msra.mxu0 0.0
        %447 = vmatpush.msra.mxu0 0.0
        %448 = vmatpush.msra.mxu0 0.0
        %449 = vmatpush.msra.mxu0 0.0
        %450 = vmatpush.msra.mxu0 0.0
        %451 = vmatpush.msra.mxu0 0.0
        %452 = vmatpush.msra.mxu0 0.0
        %453 = vmatpush.msra.mxu0 0.0
        %454 = vmatpush.msra.mxu0 0.0
        %455 = vmatpush.msra.mxu0 0.0
        %456 = vmatpush.msra.mxu0 0.0
        %457 = vmatpush.msra.mxu0 0.0
        %458 = vmatpush.msra.mxu0 0.0
        %459 = vmatpush.msra.mxu0 0.0
        %460 = vmatpush.msra.mxu0 %v386
        %461 = vmatmul.f32.gmra.mxu0 %v411
        %v462 = vpop.f32.mrf.mxu0
        %v463 = vadd.f32 %v397, %v462
        %464 = vmatmul.f32.gmra.mxu0 %v414
        %v465 = vpop.f32.mrf.mxu0
        %v466 = vadd.f32 %v402, %v465
        %467 = vmatmul.f32.gmra.mxu0 %v417
        %v468 = vpop.f32.mrf.mxu0
        %v469 = vadd.f32 %v407, %v468
        %470 = vdwg.mxu0
        %471 = vmatpush.msra.mxu0 0.0
        %472 = vmatpush.msra.mxu0 0.0
        %473 = vmatpush.msra.mxu0 0.0
        %474 = vmatpush.msra.mxu0 0.0
        %475 = vmatpush.msra.mxu0 0.0
        %476 = vmatpush.msra.mxu0 0.0
        %477 = vmatpush.msra.mxu0 0.0
        %478 = vmatpush.msra.mxu0 0.0
        %479 = vmatpush.msra.mxu0 0.0
        %480 = vmatpush.msra.mxu0 0.0
        %481 = vmatpush.msra.mxu0 0.0
        %482 = vmatpush.msra.mxu0 0.0
        %483 = vmatpush.msra.mxu0 0.0
        %484 = vmatpush.msra.mxu0 0.0
        %485 = vmatpush.msra.mxu0 0.0
        %486 = vmatpush.msra.mxu0 %v387
        %487 = vmatmul.f32.gmra.mxu0 %v411
        %v488 = vpop.f32.mrf.mxu0
        %v489 = vadd.f32 %v397, %v488
        %490 = vmatmul.f32.gmra.mxu0 %v414
        %v491 = vpop.f32.mrf.mxu0
        %v492 = vadd.f32 %v402, %v491
        %493 = vmatmul.f32.gmra.mxu0 %v417
        %v494 = vpop.f32.mrf.mxu0
        %v495 = vadd.f32 %v407, %v494
        %496 = vdwg.mxu0
        %497 = vst [vmem:[#allocation2] sm:$0xff] %v437
        %498 = vst [vmem:[#allocation2 + $0x8] sm:$0xff] %v463
        %499 = vst.msk [vmem:[#allocation2 + $0x10] sm:$0xff] %vm321, %v489
        %500 = vst [vmem:[#allocation2 + $0x18] sm:$0xff] %v440
        %501 = vst [vmem:[#allocation2 + $0x20] sm:$0xff] %v466
        %502 = vst.msk [vmem:[#allocation2 + $0x28] sm:$0xff] %vm321, %v492
        %503 = vst [vmem:[#allocation2 + $0x30] sm:$0x3] %v443
        %504 = vst [vmem:[#allocation2 + $0x38] sm:$0x3] %v469
        %vm505 = vcmask 254976
        %506 = vst.msk [vmem:[#allocation2 + $0x40] sm:$0x3] %vm505, %v495
        %v507 = vld [vmem:[#allocation2] ss:$8 sm:$0x7]
        %v508 = vld [vmem:[%s217] sm:$0xff]
        %v509 = vld [vmem:[%s217 + $0x8] sm:$0xff]
        %v510 = vld [vmem:[%s217 + $0x10] sm:$0xff]
        %v511 = vld [vmem:[%s217 + $0x18] sm:$0xff]
        %v512 = vld [vmem:[%s217 + $0x20] sm:$0xff]
        %v513 = vld [vmem:[%s217 + $0x28] sm:$0xff]
        %v515 = vperm.slane %v507, 0
        %v516 = vperm.slane %v507, 1
        %v517 = vperm.slane %v507, 2
        %v521 = vmul.f32 %v515, %v508
        %v522 = vmul.f32 %v516, %v509
        %v523 = vmul.f32 %v517, %v510
        %v524 = vmul.f32 %v515, %v511
        %v525 = vmul.f32 %v516, %v512
        %v526 = vmul.f32 %v517, %v513
        %v527 = vadd.f32 %v521, 0.0
        %v528 = vadd.f32 %v522, 0.0
        %v529 = vadd.f32 %v523, 0.0
        %v530 = vadd.f32 %v524, 0.0
        %v531 = vadd.f32 %v525, 0.0
        %v532 = vadd.f32 %v526, 0.0
        %s533 = scalar_lea.vmem [#allocation2], 1
        %v534 = vld [vmem:[%s533] ss:$8 sm:$0x7]
        %v536 = vperm.slane %v534, 0
        %v537 = vperm.slane %v534, 1
        %v538 = vperm.slane %v534, 2
        %548 = vrot.lane.b32.xlu0 %v508, 127
        %v549 = vpop.permute.xlu0 %548
        %550 = vrot.lane.b32.xlu0 %v509, 127
        %v551 = vpop.permute.xlu0 %550
        %552 = vrot.lane.b32.xlu0 %v510, 127
        %v553 = vpop.permute.xlu0 %552
        %554 = vrot.lane.b32.xlu0 %v511, 127
        %v555 = vpop.permute.xlu0 %554
        %556 = vrot.lane.b32.xlu0 %v512, 127
        %v557 = vpop.permute.xlu0 %556
        %558 = vrot.lane.b32.xlu0 %v513, 127
        %v559 = vpop.permute.xlu0 %558
        %vm560 = vcmask 1039360
        %v561 = vsel %vm560, %v549, %v551
        %v562 = vsel %vm560, %v551, %v553
        %v563 = vsel %vm560, %v555, %v557
        %v564 = vsel %vm560, %v557, %v559
        %v571 = vmul.f32 %v536, %v561
        %v572 = vmul.f32 %v537, %v562
        %v573 = vmul.f32 %v538, %v553
        %v574 = vmul.f32 %v536, %v563
        %v575 = vmul.f32 %v537, %v564
        %v576 = vmul.f32 %v538, %v559
        %v577 = vadd.f32 %v527, %v571
        %v578 = vadd.f32 %v528, %v572
        %v579 = vadd.f32 %v529, %v573
        %v580 = vadd.f32 %v530, %v574
        %v581 = vadd.f32 %v531, %v575
        %v582 = vadd.f32 %v532, %v576
        %s583 = scalar_lea.vmem [#allocation2], 2
        %v584 = vld [vmem:[%s583] ss:$8 sm:$0x7]
        %v586 = vperm.slane %v584, 0
        %v587 = vperm.slane %v584, 1
        %v588 = vperm.slane %v584, 2
        %592 = vrot.lane.b32.xlu0 %v508, 126
        %v593 = vpop.permute.xlu0 %592
        %594 = vrot.lane.b32.xlu0 %v509, 126
        %v595 = vpop.permute.xlu0 %594
        %596 = vrot.lane.b32.xlu0 %v510, 126
        %v597 = vpop.permute.xlu0 %596
        %598 = vrot.lane.b32.xlu0 %v511, 126
        %v599 = vpop.permute.xlu0 %598
        %600 = vrot.lane.b32.xlu0 %v512, 126
        %v601 = vpop.permute.xlu0 %600
        %602 = vrot.lane.b32.xlu0 %v513, 126
        %v603 = vpop.permute.xlu0 %602
        %vm604 = vcmask 1031168
        %v605 = vsel %vm604, %v593, %v595
        %v606 = vsel %vm604, %v595, %v597
        %v607 = vsel %vm604, %v599, %v601
        %v608 = vsel %vm604, %v601, %v603
        %v615 = vmul.f32 %v586, %v605
        %v616 = vmul.f32 %v587, %v606
        %v617 = vmul.f32 %v588, %v597
        %v618 = vmul.f32 %v586, %v607
        %v619 = vmul.f32 %v587, %v608
        %v620 = vmul.f32 %v588, %v603
        %v621 = vadd.f32 %v577, %v615
        %v622 = vadd.f32 %v578, %v616
        %v623 = vadd.f32 %v579, %v617
        %v624 = vadd.f32 %v580, %v618
        %v625 = vadd.f32 %v581, %v619
        %v626 = vadd.f32 %v582, %v620
        %s627 = scalar_lea.vmem [#allocation2], 3
        %v628 = vld [vmem:[%s627] ss:$8 sm:$0x7]
        %v630 = vperm.slane %v628, 0
        %v631 = vperm.slane %v628, 1
        %v632 = vperm.slane %v628, 2
        %636 = vrot.lane.b32.xlu0 %v508, 110
        %v637 = vpop.permute.xlu0 %636
        %638 = vrot.lane.b32.xlu0 %v509, 110
        %v639 = vpop.permute.xlu0 %638
        %640 = vrot.lane.b32.xlu0 %v510, 110
        %v641 = vpop.permute.xlu0 %640
        %642 = vrot.lane.b32.xlu0 %v511, 110
        %v643 = vpop.permute.xlu0 %642
        %644 = vrot.lane.b32.xlu0 %v512, 110
        %v645 = vpop.permute.xlu0 %644
        %646 = vrot.lane.b32.xlu0 %v513, 110
        %v647 = vpop.permute.xlu0 %646
        %vm648 = vcmask 900096
        %v649 = vsel %vm648, %v637, %v639
        %v650 = vsel %vm648, %v639, %v641
        %v651 = vsel %vm648, %v643, %v645
        %v652 = vsel %vm648, %v645, %v647
        %v659 = vmul.f32 %v630, %v649
        %v660 = vmul.f32 %v631, %v650
        %v661 = vmul.f32 %v632, %v641
        %v662 = vmul.f32 %v630, %v651
        %v663 = vmul.f32 %v631, %v652
        %v664 = vmul.f32 %v632, %v647
        %v665 = vadd.f32 %v621, %v659
        %v666 = vadd.f32 %v622, %v660
        %v667 = vadd.f32 %v623, %v661
        %v668 = vadd.f32 %v624, %v662
        %v669 = vadd.f32 %v625, %v663
        %v670 = vadd.f32 %v626, %v664
        %s671 = scalar_lea.vmem [#allocation2], 4
        %v672 = vld [vmem:[%s671] ss:$8 sm:$0x7]
        %v674 = vperm.slane %v672, 0
        %v675 = vperm.slane %v672, 1
        %v676 = vperm.slane %v672, 2
        %680 = vrot.lane.b32.xlu0 %v508, 109
        %v681 = vpop.permute.xlu0 %680
        %682 = vrot.lane.b32.xlu0 %v509, 109
        %v683 = vpop.permute.xlu0 %682
        %684 = vrot.lane.b32.xlu0 %v510, 109
        %v685 = vpop.permute.xlu0 %684
        %686 = vrot.lane.b32.xlu0 %v511, 109
        %v687 = vpop.permute.xlu0 %686
        %688 = vrot.lane.b32.xlu0 %v512, 109
        %v689 = vpop.permute.xlu0 %688
        %690 = vrot.lane.b32.xlu0 %v513, 109
        %v691 = vpop.permute.xlu0 %690
        %v692 = vsel %vm300, %v681, %v683
        %v693 = vsel %vm300, %v683, %v685
        %v694 = vsel %vm300, %v687, %v689
        %v695 = vsel %vm300, %v689, %v691
        %v702 = vmul.f32 %v674, %v692
        %v703 = vmul.f32 %v675, %v693
        %v704 = vmul.f32 %v676, %v685
        %v705 = vmul.f32 %v674, %v694
        %v706 = vmul.f32 %v675, %v695
        %v707 = vmul.f32 %v676, %v691
        %v708 = vadd.f32 %v665, %v702
        %v709 = vadd.f32 %v666, %v703
        %v710 = vadd.f32 %v667, %v704
        %v711 = vadd.f32 %v668, %v705
        %v712 = vadd.f32 %v669, %v706
        %v713 = vadd.f32 %v670, %v707
        %s714 = scalar_lea.vmem [#allocation2], 5
        %v715 = vld [vmem:[%s714] ss:$8 sm:$0x7]
        %v717 = vperm.slane %v715, 0
        %v718 = vperm.slane %v715, 1
        %v719 = vperm.slane %v715, 2
        %723 = vrot.lane.b32.xlu0 %v508, 108
        %v724 = vpop.permute.xlu0 %723
        %725 = vrot.lane.b32.xlu0 %v509, 108
        %v726 = vpop.permute.xlu0 %725
        %727 = vrot.lane.b32.xlu0 %v510, 108
        %v728 = vpop.permute.xlu0 %727
        %729 = vrot.lane.b32.xlu0 %v511, 108
        %v730 = vpop.permute.xlu0 %729
        %731 = vrot.lane.b32.xlu0 %v512, 108
        %v732 = vpop.permute.xlu0 %731
        %733 = vrot.lane.b32.xlu0 %v513, 108
        %v734 = vpop.permute.xlu0 %733
        %vm735 = vcmask 883712
        %v736 = vsel %vm735, %v724, %v726
        %v737 = vsel %vm735, %v726, %v728
        %v738 = vsel %vm735, %v730, %v732
        %v739 = vsel %vm735, %v732, %v734
        %v746 = vmul.f32 %v717, %v736
        %v747 = vmul.f32 %v718, %v737
        %v748 = vmul.f32 %v719, %v728
        %v749 = vmul.f32 %v717, %v738
        %v750 = vmul.f32 %v718, %v739
        %v751 = vmul.f32 %v719, %v734
        %v752 = vadd.f32 %v708, %v746
        %v753 = vadd.f32 %v709, %v747
        %v754 = vadd.f32 %v710, %v748
        %v755 = vadd.f32 %v711, %v749
        %v756 = vadd.f32 %v712, %v750
        %v757 = vadd.f32 %v713, %v751
        %s758 = scalar_lea.vmem [#allocation2], 6
        %v759 = vld [vmem:[%s758] ss:$8 sm:$0x7]
        %v761 = vperm.slane %v759, 0
        %v762 = vperm.slane %v759, 1
        %v763 = vperm.slane %v759, 2
        %767 = vrot.lane.b32.xlu0 %v508, 92
        %v768 = vpop.permute.xlu0 %767
        %769 = vrot.lane.b32.xlu0 %v509, 92
        %v770 = vpop.permute.xlu0 %769
        %771 = vrot.lane.b32.xlu0 %v510, 92
        %v772 = vpop.permute.xlu0 %771
        %773 = vrot.lane.b32.xlu0 %v511, 92
        %v774 = vpop.permute.xlu0 %773
        %775 = vrot.lane.b32.xlu0 %v512, 92
        %v776 = vpop.permute.xlu0 %775
        %777 = vrot.lane.b32.xlu0 %v513, 92
        %v778 = vpop.permute.xlu0 %777
        %vm779 = vcmask 752640
        %v780 = vsel %vm779, %v768, %v770
        %v781 = vsel %vm779, %v770, %v772
        %v782 = vsel %vm779, %v774, %v776
        %v783 = vsel %vm779, %v776, %v778
        %v790 = vmul.f32 %v761, %v780
        %v791 = vmul.f32 %v762, %v781
        %v792 = vmul.f32 %v763, %v772
        %v793 = vmul.f32 %v761, %v782
        %v794 = vmul.f32 %v762, %v783
        %v795 = vmul.f32 %v763, %v778
        %v796 = vadd.f32 %v752, %v790
        %v797 = vadd.f32 %v753, %v791
        %v798 = vadd.f32 %v754, %v792
        %v799 = vadd.f32 %v755, %v793
        %v800 = vadd.f32 %v756, %v794
        %v801 = vadd.f32 %v757, %v795
        %s802 = scalar_lea.vmem [#allocation2], 7
        %v803 = vld [vmem:[%s802] ss:$8 sm:$0x7]
        %v805 = vperm.slane %v803, 0
        %v806 = vperm.slane %v803, 1
        %v807 = vperm.slane %v803, 2
        %811 = vrot.lane.b32.xlu0 %v508, 91
        %v812 = vpop.permute.xlu0 %811
        %813 = vrot.lane.b32.xlu0 %v509, 91
        %v814 = vpop.permute.xlu0 %813
        %815 = vrot.lane.b32.xlu0 %v510, 91
        %v816 = vpop.permute.xlu0 %815
        %817 = vrot.lane.b32.xlu0 %v511, 91
        %v818 = vpop.permute.xlu0 %817
        %819 = vrot.lane.b32.xlu0 %v512, 91
        %v820 = vpop.permute.xlu0 %819
        %821 = vrot.lane.b32.xlu0 %v513, 91
        %v822 = vpop.permute.xlu0 %821
        %vm823 = vcmask 744448
        %v824 = vsel %vm823, %v812, %v814
        %v825 = vsel %vm823, %v814, %v816
        %v826 = vsel %vm823, %v818, %v820
        %v827 = vsel %vm823, %v820, %v822
        %v834 = vmul.f32 %v805, %v824
        %v835 = vmul.f32 %v806, %v825
        %v836 = vmul.f32 %v807, %v816
        %v837 = vmul.f32 %v805, %v826
        %v838 = vmul.f32 %v806, %v827
        %v839 = vmul.f32 %v807, %v822
        %v840 = vadd.f32 %v796, %v834
        %v841 = vadd.f32 %v797, %v835
        %v842 = vadd.f32 %v798, %v836
        %v843 = vadd.f32 %v799, %v837
        %v844 = vadd.f32 %v800, %v838
        %v845 = vadd.f32 %v801, %v839
        %s846 = scalar_lea.vmem [#allocation2], 24
        %v847 = vld [vmem:[%s846] ss:$8 sm:$0x7]
        %v849 = vperm.slane %v847, 0
        %v850 = vperm.slane %v847, 1
        %v851 = vperm.slane %v847, 2
        %855 = vrot.lane.b32.xlu0 %v508, 90
        %v856 = vpop.permute.xlu0 %855
        %857 = vrot.lane.b32.xlu0 %v509, 90
        %v858 = vpop.permute.xlu0 %857
        %859 = vrot.lane.b32.xlu0 %v510, 90
        %v860 = vpop.permute.xlu0 %859
        %861 = vrot.lane.b32.xlu0 %v511, 90
        %v862 = vpop.permute.xlu0 %861
        %863 = vrot.lane.b32.xlu0 %v512, 90
        %v864 = vpop.permute.xlu0 %863
        %865 = vrot.lane.b32.xlu0 %v513, 90
        %v866 = vpop.permute.xlu0 %865
        %vm867 = vcmask 736256
        %v868 = vsel %vm867, %v856, %v858
        %v869 = vsel %vm867, %v858, %v860
        %v870 = vsel %vm867, %v862, %v864
        %v871 = vsel %vm867, %v864, %v866
        %v878 = vmul.f32 %v849, %v868
        %v879 = vmul.f32 %v850, %v869
        %v880 = vmul.f32 %v851, %v860
        %v881 = vmul.f32 %v849, %v870
        %v882 = vmul.f32 %v850, %v871
        %v883 = vmul.f32 %v851, %v866
        %v884 = vadd.f32 %v840, %v878
        %v885 = vadd.f32 %v841, %v879
        %v886 = vadd.f32 %v842, %v880
        %v887 = vadd.f32 %v843, %v881
        %v888 = vadd.f32 %v844, %v882
        %v889 = vadd.f32 %v845, %v883
        %890 = vst [vmem:[%s244] sm:$0xff] %v884
        %891 = vst [vmem:[%s244 + $0x8] sm:$0xff] %v885
        %892 = vst.msk [vmem:[%s244 + $0x10] sm:$0xff] %vm321, %v886
        %893 = vst [vmem:[%s244 + $0x18] sm:$0xff] %v887
        %894 = vst [vmem:[%s244 + $0x20] sm:$0xff] %v888
        %895 = vst.msk [vmem:[%s244 + $0x28] sm:$0xff] %vm321, %v889
        %s896 = scalar_lea.vmem [#allocation2], 25
        %v897 = vld [vmem:[%s896] ss:$8 sm:$0x7]
        %v898 = vld [vmem:[%s217 + $0x30] sm:$0xff]
        %v899 = vld [vmem:[%s217 + $0x38] sm:$0xff]
        %v900 = vld [vmem:[%s217 + $0x40] sm:$0xff]
        %v901 = vld [vmem:[%s217 + $0x48] sm:$0xff]
        %v902 = vld [vmem:[%s217 + $0x50] sm:$0xff]
        %v903 = vld [vmem:[%s217 + $0x58] sm:$0xff]
        %v905 = vperm.slane %v897, 0
        %v906 = vperm.slane %v897, 1
        %v907 = vperm.slane %v897, 2
        %v911 = vmul.f32 %v905, %v898
        %v912 = vmul.f32 %v906, %v899
        %v913 = vmul.f32 %v907, %v900
        %v914 = vmul.f32 %v905, %v901
        %v915 = vmul.f32 %v906, %v902
        %v916 = vmul.f32 %v907, %v903
        %v917 = vadd.f32 %v911, 0.0
        %v918 = vadd.f32 %v912, 0.0
        %v919 = vadd.f32 %v913, 0.0
        %v920 = vadd.f32 %v914, 0.0
        %v921 = vadd.f32 %v915, 0.0
        %v922 = vadd.f32 %v916, 0.0
        %s923 = scalar_lea.vmem [#allocation2], 26
        %v924 = vld [vmem:[%s923] ss:$8 sm:$0x7]
        %v926 = vperm.slane %v924, 0
        %v927 = vperm.slane %v924, 1
        %v928 = vperm.slane %v924, 2
        %938 = vrot.lane.b32.xlu0 %v898, 127
        %v939 = vpop.permute.xlu0 %938
        %940 = vrot.lane.b32.xlu0 %v899, 127
        %v941 = vpop.permute.xlu0 %940
        %942 = vrot.lane.b32.xlu0 %v900, 127
        %v943 = vpop.permute.xlu0 %942
        %944 = vrot.lane.b32.xlu0 %v901, 127
        %v945 = vpop.permute.xlu0 %944
        %946 = vrot.lane.b32.xlu0 %v902, 127
        %v947 = vpop.permute.xlu0 %946
        %948 = vrot.lane.b32.xlu0 %v903, 127
        %v949 = vpop.permute.xlu0 %948
        %v950 = vsel %vm560, %v939, %v941
        %v951 = vsel %vm560, %v941, %v943
        %v952 = vsel %vm560, %v945, %v947
        %v953 = vsel %vm560, %v947, %v949
        %v960 = vmul.f32 %v926, %v950
        %v961 = vmul.f32 %v927, %v951
        %v962 = vmul.f32 %v928, %v943
        %v963 = vmul.f32 %v926, %v952
        %v964 = vmul.f32 %v927, %v953
        %v965 = vmul.f32 %v928, %v949
        %v966 = vadd.f32 %v917, %v960
        %v967 = vadd.f32 %v918, %v961
        %v968 = vadd.f32 %v919, %v962
        %v969 = vadd.f32 %v920, %v963
        %v970 = vadd.f32 %v921, %v964
        %v971 = vadd.f32 %v922, %v965
        %s972 = scalar_lea.vmem [#allocation2], 27
        %v973 = vld [vmem:[%s972] ss:$8 sm:$0x7]
        %v975 = vperm.slane %v973, 0
        %v976 = vperm.slane %v973, 1
        %v977 = vperm.slane %v973, 2
        %981 = vrot.lane.b32.xlu0 %v898, 126
        %v982 = vpop.permute.xlu0 %981
        %983 = vrot.lane.b32.xlu0 %v899, 126
        %v984 = vpop.permute.xlu0 %983
        %985 = vrot.lane.b32.xlu0 %v900, 126
        %v986 = vpop.permute.xlu0 %985
        %987 = vrot.lane.b32.xlu0 %v901, 126
        %v988 = vpop.permute.xlu0 %987
        %989 = vrot.lane.b32.xlu0 %v902, 126
        %v990 = vpop.permute.xlu0 %989
        %991 = vrot.lane.b32.xlu0 %v903, 126
        %v992 = vpop.permute.xlu0 %991
        %v993 = vsel %vm604, %v982, %v984
        %v994 = vsel %vm604, %v984, %v986
        %v995 = vsel %vm604, %v988, %v990
        %v996 = vsel %vm604, %v990, %v992
        %v1003 = vmul.f32 %v975, %v993
        %v1004 = vmul.f32 %v976, %v994
        %v1005 = vmul.f32 %v977, %v986
        %v1006 = vmul.f32 %v975, %v995
        %v1007 = vmul.f32 %v976, %v996
        %v1008 = vmul.f32 %v977, %v992
        %v1009 = vadd.f32 %v966, %v1003
        %v1010 = vadd.f32 %v967, %v1004
        %v1011 = vadd.f32 %v968, %v1005
        %v1012 = vadd.f32 %v969, %v1006
        %v1013 = vadd.f32 %v970, %v1007
        %v1014 = vadd.f32 %v971, %v1008
        %s1015 = scalar_lea.vmem [#allocation2], 28
        %v1016 = vld [vmem:[%s1015] ss:$8 sm:$0x7]
        %v1018 = vperm.slane %v1016, 0
        %v1019 = vperm.slane %v1016, 1
        %v1020 = vperm.slane %v1016, 2
        %1024 = vrot.lane.b32.xlu0 %v898, 110
        %v1025 = vpop.permute.xlu0 %1024
        %1026 = vrot.lane.b32.xlu0 %v899, 110
        %v1027 = vpop.permute.xlu0 %1026
        %1028 = vrot.lane.b32.xlu0 %v900, 110
        %v1029 = vpop.permute.xlu0 %1028
        %1030 = vrot.lane.b32.xlu0 %v901, 110
        %v1031 = vpop.permute.xlu0 %1030
        %1032 = vrot.lane.b32.xlu0 %v902, 110
        %v1033 = vpop.permute.xlu0 %1032
        %1034 = vrot.lane.b32.xlu0 %v903, 110
        %v1035 = vpop.permute.xlu0 %1034
        %v1036 = vsel %vm648, %v1025, %v1027
        %v1037 = vsel %vm648, %v1027, %v1029
        %v1038 = vsel %vm648, %v1031, %v1033
        %v1039 = vsel %vm648, %v1033, %v1035
        %v1046 = vmul.f32 %v1018, %v1036
        %v1047 = vmul.f32 %v1019, %v1037
        %v1048 = vmul.f32 %v1020, %v1029
        %v1049 = vmul.f32 %v1018, %v1038
        %v1050 = vmul.f32 %v1019, %v1039
        %v1051 = vmul.f32 %v1020, %v1035
        %v1052 = vadd.f32 %v1009, %v1046
        %v1053 = vadd.f32 %v1010, %v1047
        %v1054 = vadd.f32 %v1011, %v1048
        %v1055 = vadd.f32 %v1012, %v1049
        %v1056 = vadd.f32 %v1013, %v1050
        %v1057 = vadd.f32 %v1014, %v1051
        %s1058 = scalar_lea.vmem [#allocation2], 29
        %v1059 = vld [vmem:[%s1058] ss:$8 sm:$0x7]
        %v1061 = vperm.slane %v1059, 0
        %v1062 = vperm.slane %v1059, 1
        %v1063 = vperm.slane %v1059, 2
        %1067 = vrot.lane.b32.xlu0 %v898, 109
        %v1068 = vpop.permute.xlu0 %1067
        %1069 = vrot.lane.b32.xlu0 %v899, 109
        %v1070 = vpop.permute.xlu0 %1069
        %1071 = vrot.lane.b32.xlu0 %v900, 109
        %v1072 = vpop.permute.xlu0 %1071
        %1073 = vrot.lane.b32.xlu0 %v901, 109
        %v1074 = vpop.permute.xlu0 %1073
        %1075 = vrot.lane.b32.xlu0 %v902, 109
        %v1076 = vpop.permute.xlu0 %1075
        %1077 = vrot.lane.b32.xlu0 %v903, 109
        %v1078 = vpop.permute.xlu0 %1077
        %v1079 = vsel %vm300, %v1068, %v1070
        %v1080 = vsel %vm300, %v1070, %v1072
        %v1081 = vsel %vm300, %v1074, %v1076
        %v1082 = vsel %vm300, %v1076, %v1078
        %v1089 = vmul.f32 %v1061, %v1079
        %v1090 = vmul.f32 %v1062, %v1080
        %v1091 = vmul.f32 %v1063, %v1072
        %v1092 = vmul.f32 %v1061, %v1081
        %v1093 = vmul.f32 %v1062, %v1082
        %v1094 = vmul.f32 %v1063, %v1078
        %v1095 = vadd.f32 %v1052, %v1089
        %v1096 = vadd.f32 %v1053, %v1090
        %v1097 = vadd.f32 %v1054, %v1091
        %v1098 = vadd.f32 %v1055, %v1092
        %v1099 = vadd.f32 %v1056, %v1093
        %v1100 = vadd.f32 %v1057, %v1094
        %s1101 = scalar_lea.vmem [#allocation2], 30
        %v1102 = vld [vmem:[%s1101] ss:$8 sm:$0x7]
        %v1104 = vperm.slane %v1102, 0
        %v1105 = vperm.slane %v1102, 1
        %v1106 = vperm.slane %v1102, 2
        %1110 = vrot.lane.b32.xlu0 %v898, 108
        %v1111 = vpop.permute.xlu0 %1110
        %1112 = vrot.lane.b32.xlu0 %v899, 108
        %v1113 = vpop.permute.xlu0 %1112
        %1114 = vrot.lane.b32.xlu0 %v900, 108
        %v1115 = vpop.permute.xlu0 %1114
        %1116 = vrot.lane.b32.xlu0 %v901, 108
        %v1117 = vpop.permute.xlu0 %1116
        %1118 = vrot.lane.b32.xlu0 %v902, 108
        %v1119 = vpop.permute.xlu0 %1118
        %1120 = vrot.lane.b32.xlu0 %v903, 108
        %v1121 = vpop.permute.xlu0 %1120
        %v1122 = vsel %vm735, %v1111, %v1113
        %v1123 = vsel %vm735, %v1113, %v1115
        %v1124 = vsel %vm735, %v1117, %v1119
        %v1125 = vsel %vm735, %v1119, %v1121
        %v1132 = vmul.f32 %v1104, %v1122
        %v1133 = vmul.f32 %v1105, %v1123
        %v1134 = vmul.f32 %v1106, %v1115
        %v1135 = vmul.f32 %v1104, %v1124
        %v1136 = vmul.f32 %v1105, %v1125
        %v1137 = vmul.f32 %v1106, %v1121
        %v1138 = vadd.f32 %v1095, %v1132
        %v1139 = vadd.f32 %v1096, %v1133
        %v1140 = vadd.f32 %v1097, %v1134
        %v1141 = vadd.f32 %v1098, %v1135
        %v1142 = vadd.f32 %v1099, %v1136
        %v1143 = vadd.f32 %v1100, %v1137
        %s1144 = scalar_lea.vmem [#allocation2], 31
        %v1145 = vld [vmem:[%s1144] ss:$8 sm:$0x7]
        %v1147 = vperm.slane %v1145, 0
        %v1148 = vperm.slane %v1145, 1
        %v1149 = vperm.slane %v1145, 2
        %1153 = vrot.lane.b32.xlu0 %v898, 92
        %v1154 = vpop.permute.xlu0 %1153
        %1155 = vrot.lane.b32.xlu0 %v899, 92
        %v1156 = vpop.permute.xlu0 %1155
        %1157 = vrot.lane.b32.xlu0 %v900, 92
        %v1158 = vpop.permute.xlu0 %1157
        %1159 = vrot.lane.b32.xlu0 %v901, 92
        %v1160 = vpop.permute.xlu0 %1159
        %1161 = vrot.lane.b32.xlu0 %v902, 92
        %v1162 = vpop.permute.xlu0 %1161
        %1163 = vrot.lane.b32.xlu0 %v903, 92
        %v1164 = vpop.permute.xlu0 %1163
        %v1165 = vsel %vm779, %v1154, %v1156
        %v1166 = vsel %vm779, %v1156, %v1158
        %v1167 = vsel %vm779, %v1160, %v1162
        %v1168 = vsel %vm779, %v1162, %v1164
        %v1175 = vmul.f32 %v1147, %v1165
        %v1176 = vmul.f32 %v1148, %v1166
        %v1177 = vmul.f32 %v1149, %v1158
        %v1178 = vmul.f32 %v1147, %v1167
        %v1179 = vmul.f32 %v1148, %v1168
        %v1180 = vmul.f32 %v1149, %v1164
        %v1181 = vadd.f32 %v1138, %v1175
        %v1182 = vadd.f32 %v1139, %v1176
        %v1183 = vadd.f32 %v1140, %v1177
        %v1184 = vadd.f32 %v1141, %v1178
        %v1185 = vadd.f32 %v1142, %v1179
        %v1186 = vadd.f32 %v1143, %v1180
        %s1187 = scalar_lea.vmem [#allocation2], 48
        %v1188 = vld [vmem:[%s1187] ss:$8 sm:$0x7]
        %v1190 = vperm.slane %v1188, 0
        %v1191 = vperm.slane %v1188, 1
        %v1192 = vperm.slane %v1188, 2
        %1196 = vrot.lane.b32.xlu0 %v898, 91
        %v1197 = vpop.permute.xlu0 %1196
        %1198 = vrot.lane.b32.xlu0 %v899, 91
        %v1199 = vpop.permute.xlu0 %1198
        %1200 = vrot.lane.b32.xlu0 %v900, 91
        %v1201 = vpop.permute.xlu0 %1200
        %1202 = vrot.lane.b32.xlu0 %v901, 91
        %v1203 = vpop.permute.xlu0 %1202
        %1204 = vrot.lane.b32.xlu0 %v902, 91
        %v1205 = vpop.permute.xlu0 %1204
        %1206 = vrot.lane.b32.xlu0 %v903, 91
        %v1207 = vpop.permute.xlu0 %1206
        %v1208 = vsel %vm823, %v1197, %v1199
        %v1209 = vsel %vm823, %v1199, %v1201
        %v1210 = vsel %vm823, %v1203, %v1205
        %v1211 = vsel %vm823, %v1205, %v1207
        %v1218 = vmul.f32 %v1190, %v1208
        %v1219 = vmul.f32 %v1191, %v1209
        %v1220 = vmul.f32 %v1192, %v1201
        %v1221 = vmul.f32 %v1190, %v1210
        %v1222 = vmul.f32 %v1191, %v1211
        %v1223 = vmul.f32 %v1192, %v1207
        %v1224 = vadd.f32 %v1181, %v1218
        %v1225 = vadd.f32 %v1182, %v1219
        %v1226 = vadd.f32 %v1183, %v1220
        %v1227 = vadd.f32 %v1184, %v1221
        %v1228 = vadd.f32 %v1185, %v1222
        %v1229 = vadd.f32 %v1186, %v1223
        %s1230 = scalar_lea.vmem [#allocation2], 49
        %v1231 = vld [vmem:[%s1230] ss:$8 sm:$0x7]
        %v1233 = vperm.slane %v1231, 0
        %v1234 = vperm.slane %v1231, 1
        %v1235 = vperm.slane %v1231, 2
        %1239 = vrot.lane.b32.xlu0 %v898, 90
        %v1240 = vpop.permute.xlu0 %1239
        %1241 = vrot.lane.b32.xlu0 %v899, 90
        %v1242 = vpop.permute.xlu0 %1241
        %1243 = vrot.lane.b32.xlu0 %v900, 90
        %v1244 = vpop.permute.xlu0 %1243
        %1245 = vrot.lane.b32.xlu0 %v901, 90
        %v1246 = vpop.permute.xlu0 %1245
        %1247 = vrot.lane.b32.xlu0 %v902, 90
        %v1248 = vpop.permute.xlu0 %1247
        %1249 = vrot.lane.b32.xlu0 %v903, 90
        %v1250 = vpop.permute.xlu0 %1249
        %v1251 = vsel %vm867, %v1240, %v1242
        %v1252 = vsel %vm867, %v1242, %v1244
        %v1253 = vsel %vm867, %v1246, %v1248
        %v1254 = vsel %vm867, %v1248, %v1250
        %v1261 = vmul.f32 %v1233, %v1251
        %v1262 = vmul.f32 %v1234, %v1252
        %v1263 = vmul.f32 %v1235, %v1244
        %v1264 = vmul.f32 %v1233, %v1253
        %v1265 = vmul.f32 %v1234, %v1254
        %v1266 = vmul.f32 %v1235, %v1250
        %v1267 = vadd.f32 %v1224, %v1261
        %v1268 = vadd.f32 %v1225, %v1262
        %v1269 = vadd.f32 %v1226, %v1263
        %v1270 = vadd.f32 %v1227, %v1264
        %v1271 = vadd.f32 %v1228, %v1265
        %v1272 = vadd.f32 %v1229, %v1266
        %1273 = vst [vmem:[%s244 + $0x30] sm:$0xff] %v1267
        %1274 = vst [vmem:[%s244 + $0x38] sm:$0xff] %v1268
        %1275 = vst.msk [vmem:[%s244 + $0x40] sm:$0xff] %vm321, %v1269
        %1276 = vst [vmem:[%s244 + $0x48] sm:$0xff] %v1270
        %1277 = vst [vmem:[%s244 + $0x50] sm:$0xff] %v1271
        %1278 = vst.msk [vmem:[%s244 + $0x58] sm:$0xff] %vm321, %v1272
        %s1279 = sand.u32 %s140, 1
        %s1280 = scalar_lea.sflag [#allocation5], %s1279
        %s1281 = sand.u32 %s140, 1
        %s1282 = smul.addr %s1281, 96
        %s1283 = scalar_lea.vmem [#allocation6], %s1282
        // Predicated region
        $region45: #{tpu_custom_call.1} parent=39 // pred_check
          %p1284 = pneg %p150
        $region46: #{tpu_custom_call.1} parent=39 // pred_check_branch
          %1286 = sbr.rel (%p1284) target = $region48
        $region47: #{tpu_custom_call.1} parent=39 // pred_region
          %1288 = vsyncadd %s1280, 0
          %s1289 = smul.addr %s22, 12
          %s1290 = smul.addr %s1289, 8
          %s1291 = scalar_lea.hbm %s5, %s1290
          %s1292 = sshll.u32 %s1283, 4
          %s1293 = int_to_ptr.vmem [resolvable:$true] %s1292
          %s1294 = sshll.u32 %s1291, 4
          %s1295 = int_to_ptr.hbm [resolvable:$true] %s1294
          %1300 = dma.vmem_to_hbm [thread:$0]  %s1293, 1536, %s1295, %s1280, 384, 384, 24
        $region48: #{tpu_custom_call.1} parent=39 // pred_fallthru
          _
      $region40: #{tpu_custom_call.1} parent=5 // pred_fallthru
        _
      %p1301 = scmp.le.s32.totalorder 2, %s17
      // Predicated region
      $region49: #{tpu_custom_call.1} parent=5 // pred_check
        %p1302 = pneg %p1301
      $region50: #{tpu_custom_call.1} parent=5 // pred_check_branch
        %1304 = sbr.rel (%p1302) target = $region52
      $region51: #{tpu_custom_call.1} parent=5 // pred_region
        %s1305 = ssub.s32 %s17, 2
        // Predicated region
        $region53: #{tpu_custom_call.1} parent=51 // pred_check
          %p1306 = pneg %p156
        $region54: #{tpu_custom_call.1} parent=51 // pred_check_branch
          %1308 = sbr.rel (%p1306) target = $region56
        $region55: #{tpu_custom_call.1} parent=51 // pred_region
          %s1309 = sand.u32 %s141, 1
          %s1310 = scalar_lea.sflag [#allocation5], %s1309
          %s1311 = sand.u32 %s141, 1
          %s1312 = smul.addr %s1311, 96
          %s1313 = scalar_lea.vmem [#allocation6], %s1312
          %1315 = dma.done %s1310, 1536
        $region56: #{tpu_custom_call.1} parent=51 // pred_fallthru
          _
      $region52: #{tpu_custom_call.1} parent=5 // pred_fallthru
        _
    $region6: #{tpu_custom_call.1} parent=1 // loop_footer
      %s21 = sadd.s32 1, %s17
    $region7: #{tpu_custom_call.1} parent=1 // loop_footer_branch
      %16 = sbr.rel target = $region3
    $region8: #{tpu_custom_call.1} parent=1 // loop_exit
      _
    %1316 = vsyncpa [#allocation4], 1
    %s1317 = scalar_lea.sflag [#allocation4], 1
    %1318 = vsyncpa %s1317, 1
    %1319 = vsyncpa [#allocation5], 1
    %s1320 = scalar_lea.sflag [#allocation5], 1
    %1321 = vsyncpa %s1320, 1

</llo_original>
